<compile_context>
chip_gen: v6e
topology: v6e:2x2x1
jax: 0.10.0
libtpu: 0.0.40
codegen_flags: <defaults>
</compile_context>

<pallas_src>
import math

import jax
import jax.numpy as jnp
from jax.experimental import pallas as pl
from jax.experimental.pallas import tpu as pltpu

# Offsets into the packed parameter vector (22 f32 scalars total).
_W1, _B1 = 0, 3        # Linear(1,3): W1[j,0] at _W1+j, b1[j] at _B1+j
_W2, _B2 = 6, 15       # Linear(3,3): W2[j,i] at _W2+3j+i, b2[j] at _B2+j
_W3, _B3 = 18, 21      # Linear(3,1): W3[0,i] at _W3+i, b3[0] at _B3
_N_PARAMS = 22

# Tiling policy.
_MAX_COLS = 1024                 # lane axis: long unmasked bursts
_MIN_ROWS = 8                    # sublane granularity
_MAX_BLOCK_ELEMS = 512 * 1024    # 2 MiB f32 per block (safe on v7x's 64 MiB VMEM)
_TARGET_STEPS = 8                # grid steps for pipelining + v7x 2-TC sharding


def _round_up(n, m):
    return ((n + m - 1) // m) * m


def _choose_tiling(B):
    """Pick a lane-dense (total_rows, cols) slab and a (rows, cols) block."""
    # cols: multiple of 128.  Prefer an exact divisor of B so the (B,) -> 2-D
    # reshape is metadata-only (no pad copy in, no slice copy out).
    if B % 128 == 0:
        cols = 128
        for c in (1024, 512, 256):
            if B % c == 0:
                cols = c
                break
    else:
        cols = min(_MAX_COLS, _round_up(max(B, 1), 128))
    total_rows = pl.cdiv(B, cols)

    # rows per block: multiple of 8, block <= ~2 MiB, and small enough to give
    # ~_TARGET_STEPS grid steps (the last block may be partial; Pallas masks it).
    if total_rows <= _MIN_ROWS:
        rows = total_rows                      # single block == full array dim
    else:
        max_rows = max(_MIN_ROWS,
                       (_MAX_BLOCK_ELEMS // cols) // _MIN_ROWS * _MIN_ROWS)
        rows = _round_up(pl.cdiv(total_rows, _TARGET_STEPS), _MIN_ROWS)
        rows = min(rows, max_rows)
    grid_steps = pl.cdiv(total_rows, rows)
    return cols, rows, total_rows, grid_steps


def mlp_kernel(p_ref, x_ref, o_ref):
    # p_ref: (22,) f32 in SMEM (scalar reads, broadcast on the VPU).
    # x_ref / o_ref: (rows, cols) f32 VMEM tiles; batch on sublanes+lanes.
    x = x_ref[...]

    # Layer 1: Linear(1 -> 3) + ReLU.  Contraction dim is 1 => scalar MAC.
    h1 = [jnp.maximum(p_ref[_W1 + j] * x + p_ref[_B1 + j], 0.0)
          for j in range(3)]

    # Layer 2: Linear(3 -> 3) + ReLU, fully unrolled scalar-broadcast MACs.
    h2 = []
    for j in range(3):
        acc = p_ref[_W2 + 3 * j + 0] * h1[0]
        acc = acc + p_ref[_W2 + 3 * j + 1] * h1[1]
        acc = acc + p_ref[_W2 + 3 * j + 2] * h1[2]
        h2.append(jnp.maximum(acc + p_ref[_B2 + j], 0.0))

    # Layer 3: Linear(3 -> 1) + Sigmoid.
    z = (p_ref[_W3 + 0] * h2[0]
         + p_ref[_W3 + 1] * h2[1]
         + p_ref[_W3 + 2] * h2[2]
         + p_ref[_B3])
    # sigmoid(z) = 0.5*tanh(0.5*z) + 0.5: tanh runs on the EUP slot, keeping the
    # multi-op f32 divide out of the saturated VALU slot.  One dense vst.
    o_ref[...] = 0.5 * jnp.tanh(0.5 * z) + 0.5


def mlp_forward(x, packed_params):
    """x: (B, *) flattened to (B, 1) -> returns (B, 1) f32."""
    B = x.shape[0]
    x2d = x.reshape(B, -1)
    assert x2d.shape[1] == 1, "MLP expects 1 input feature after Flatten"
    flat = x2d.astype(jnp.float32).reshape(-1)          # (B,)

    cols, rows, total_rows, grid_steps = _choose_tiling(B)
    padded = total_rows * cols
    if padded != B:
        # Small tail pad only (< cols elements of logical padding); with
        # allow_input_fusion XLA may fuse this straight into the kernel input.
        flat = jnp.pad(flat, (0, padded - B))
    x_slab = flat.reshape(total_rows, cols)              # metadata-only when no pad

    out_slab = pl.pallas_call(
        mlp_kernel,
        out_shape=jax.ShapeDtypeStruct((total_rows, cols), jnp.float32),
        grid=(grid_steps,),
        in_specs=[
            # All 22 params resident in SMEM; no per-step weight DMAs.
            pl.BlockSpec(memory_space=pltpu.MemorySpace.SMEM),
            # Batch row-block, double-buffered by the BlockSpec pipeline.
            pl.BlockSpec((rows, cols), lambda i: (i, 0)),
        ],
        out_specs=pl.BlockSpec((rows, cols), lambda i: (i, 0)),
        compiler_params=pltpu.CompilerParams(
            dimension_semantics=("parallel",),
            allow_input_fusion=[False, True],
        ),
    )(packed_params, x_slab)

    if padded == B:
        return out_slab.reshape(B, 1)                    # metadata-only
    return out_slab.reshape(-1)[:B].reshape(B, 1)        # drop tail padding only


def init_weights(key):
    """Deterministic init mimicking torch.nn.Linear (uniform +-1/sqrt(fan_in))."""
    ks = jax.random.split(key, 6)

    def lin(kw, kb, fan_in, fan_out):
        bound = 1.0 / math.sqrt(fan_in)
        W = jax.random.uniform(kw, (fan_out, fan_in), jnp.float32, -bound, bound)
        b = jax.random.uniform(kb, (fan_out,), jnp.float32, -bound, bound)
        return W, b

    W1, b1 = lin(ks[0], ks[1], 1, 3)      # Linear(1, 3)
    W2, b2 = lin(ks[2], ks[3], 3, 3)      # Linear(3, 3)
    W3, b3 = lin(ks[4], ks[5], 3, 1)      # Linear(3, 1)
    return W1, b1, W2, b2, W3, b3


def pack_params(weights):
    W1, b1, W2, b2, W3, b3 = weights
    packed = jnp.concatenate([
        W1.reshape(-1), b1.reshape(-1),
        W2.reshape(-1), b2.reshape(-1),
        W3.reshape(-1), b3.reshape(-1),
    ]).astype(jnp.float32)
    assert packed.shape == (_N_PARAMS,)
    return packed


def mlp_reference(x, weights):
    W1, b1, W2, b2, W3, b3 = weights
    h = x.reshape(x.shape[0], -1).astype(jnp.float32)
    h = jnp.maximum(h @ W1.T + b1, 0.0)
    h = jnp.maximum(h @ W2.T + b2, 0.0)
    return jax.nn.sigmoid(h @ W3.T + b3)


if __name__ == "__main__":
    key = jax.random.PRNGKey(0)
    k_param, k_x = jax.random.split(key)

    weights = init_weights(k_param)
    packed = pack_params(weights)

    # Input: batch of 8 scalars (Flatten maps (8, 1) -> (8, 1)).
    x = jax.random.normal(k_x, (8, 1), dtype=jnp.float32)

    out = mlp_forward(x, packed)
    out = jax.block_until_ready(out)

    ref = mlp_reference(x, weights)
    assert out.shape == (8, 1)
    assert jnp.allclose(out, ref, atol=1e-5, rtol=1e-5), (out, ref)

    print("KERNEL_OK")
</pallas_src>

<mosaic_0001>
module attributes {stable_mosaic.version = 11 : i64} {
  func.func @mlp_kernel(%arg0: i32, %arg1: memref<22xf32, #tpu.memory_space<smem>>, %arg2: memref<1x128xf32, #tpu.memory_space<vmem>>, %arg3: memref<1x128xf32, #tpu.memory_space<vmem>>) attributes {dimension_semantics = [#tpu.dimension_semantics<parallel>], iteration_bounds = array<i64: 1>, scalar_prefetch = 0 : i64, scratch_operands = 0 : i64, tpu.core_type = #tpu.core_type<tc>, window_params = [{transform_indices = @transform_0, window_bounds = array<i64: 22>}, {transform_indices = @transform_1, window_bounds = array<i64: 1, 128>}, {transform_indices = @transform_2, window_bounds = array<i64: 1, 128>}]} {
    %c0 = arith.constant 0 : index
    %c0_0 = arith.constant 0 : index
    %0 = vector.load %arg2[%c0, %c0_0] : memref<1x128xf32, #tpu.memory_space<vmem>>, vector<1x128xf32>
    %c0_1 = arith.constant 0 : index
    %1 = memref.load %arg1[%c0_1] : memref<22xf32, #tpu.memory_space<smem>>
    %2 = vector.broadcast %1 : f32 to vector<1x128xf32>
    %3 = arith.mulf %2, %0 : vector<1x128xf32>
    %c3 = arith.constant 3 : index
    %4 = memref.load %arg1[%c3] : memref<22xf32, #tpu.memory_space<smem>>
    %5 = vector.broadcast %4 : f32 to vector<1x128xf32>
    %6 = arith.addf %3, %5 : vector<1x128xf32>
    %cst = arith.constant 0.000000e+00 : f32
    %7 = vector.broadcast %cst : f32 to vector<1x128xf32>
    %8 = arith.maximumf %6, %7 : vector<1x128xf32>
    %c1 = arith.constant 1 : index
    %9 = memref.load %arg1[%c1] : memref<22xf32, #tpu.memory_space<smem>>
    %10 = vector.broadcast %9 : f32 to vector<1x128xf32>
    %11 = arith.mulf %10, %0 : vector<1x128xf32>
    %c4 = arith.constant 4 : index
    %12 = memref.load %arg1[%c4] : memref<22xf32, #tpu.memory_space<smem>>
    %13 = vector.broadcast %12 : f32 to vector<1x128xf32>
    %14 = arith.addf %11, %13 : vector<1x128xf32>
    %cst_2 = arith.constant 0.000000e+00 : f32
    %15 = vector.broadcast %cst_2 : f32 to vector<1x128xf32>
    %16 = arith.maximumf %14, %15 : vector<1x128xf32>
    %c2 = arith.constant 2 : index
    %17 = memref.load %arg1[%c2] : memref<22xf32, #tpu.memory_space<smem>>
    %18 = vector.broadcast %17 : f32 to vector<1x128xf32>
    %19 = arith.mulf %18, %0 : vector<1x128xf32>
    %c5 = arith.constant 5 : index
    %20 = memref.load %arg1[%c5] : memref<22xf32, #tpu.memory_space<smem>>
    %21 = vector.broadcast %20 : f32 to vector<1x128xf32>
    %22 = arith.addf %19, %21 : vector<1x128xf32>
    %cst_3 = arith.constant 0.000000e+00 : f32
    %23 = vector.broadcast %cst_3 : f32 to vector<1x128xf32>
    %24 = arith.maximumf %22, %23 : vector<1x128xf32>
    %c6 = arith.constant 6 : index
    %25 = memref.load %arg1[%c6] : memref<22xf32, #tpu.memory_space<smem>>
    %26 = vector.broadcast %25 : f32 to vector<1x128xf32>
    %27 = arith.mulf %26, %8 : vector<1x128xf32>
    %c7 = arith.constant 7 : index
    %28 = memref.load %arg1[%c7] : memref<22xf32, #tpu.memory_space<smem>>
    %29 = vector.broadcast %28 : f32 to vector<1x128xf32>
    %30 = arith.mulf %29, %16 : vector<1x128xf32>
    %31 = arith.addf %27, %30 : vector<1x128xf32>
    %c8 = arith.constant 8 : index
    %32 = memref.load %arg1[%c8] : memref<22xf32, #tpu.memory_space<smem>>
    %33 = vector.broadcast %32 : f32 to vector<1x128xf32>
    %34 = arith.mulf %33, %24 : vector<1x128xf32>
    %35 = arith.addf %31, %34 : vector<1x128xf32>
    %c15 = arith.constant 15 : index
    %36 = memref.load %arg1[%c15] : memref<22xf32, #tpu.memory_space<smem>>
    %37 = vector.broadcast %36 : f32 to vector<1x128xf32>
    %38 = arith.addf %35, %37 : vector<1x128xf32>
    %cst_4 = arith.constant 0.000000e+00 : f32
    %39 = vector.broadcast %cst_4 : f32 to vector<1x128xf32>
    %40 = arith.maximumf %38, %39 : vector<1x128xf32>
    %c9 = arith.constant 9 : index
    %41 = memref.load %arg1[%c9] : memref<22xf32, #tpu.memory_space<smem>>
    %42 = vector.broadcast %41 : f32 to vector<1x128xf32>
    %43 = arith.mulf %42, %8 : vector<1x128xf32>
    %c10 = arith.constant 10 : index
    %44 = memref.load %arg1[%c10] : memref<22xf32, #tpu.memory_space<smem>>
    %45 = vector.broadcast %44 : f32 to vector<1x128xf32>
    %46 = arith.mulf %45, %16 : vector<1x128xf32>
    %47 = arith.addf %43, %46 : vector<1x128xf32>
    %c11 = arith.constant 11 : index
    %48 = memref.load %arg1[%c11] : memref<22xf32, #tpu.memory_space<smem>>
    %49 = vector.broadcast %48 : f32 to vector<1x128xf32>
    %50 = arith.mulf %49, %24 : vector<1x128xf32>
    %51 = arith.addf %47, %50 : vector<1x128xf32>
    %c16 = arith.constant 16 : index
    %52 = memref.load %arg1[%c16] : memref<22xf32, #tpu.memory_space<smem>>
    %53 = vector.broadcast %52 : f32 to vector<1x128xf32>
    %54 = arith.addf %51, %53 : vector<1x128xf32>
    %cst_5 = arith.constant 0.000000e+00 : f32
    %55 = vector.broadcast %cst_5 : f32 to vector<1x128xf32>
    %56 = arith.maximumf %54, %55 : vector<1x128xf32>
    %c12 = arith.constant 12 : index
    %57 = memref.load %arg1[%c12] : memref<22xf32, #tpu.memory_space<smem>>
    %58 = vector.broadcast %57 : f32 to vector<1x128xf32>
    %59 = arith.mulf %58, %8 : vector<1x128xf32>
    %c13 = arith.constant 13 : index
    %60 = memref.load %arg1[%c13] : memref<22xf32, #tpu.memory_space<smem>>
    %61 = vector.broadcast %60 : f32 to vector<1x128xf32>
    %62 = arith.mulf %61, %16 : vector<1x128xf32>
    %63 = arith.addf %59, %62 : vector<1x128xf32>
    %c14 = arith.constant 14 : index
    %64 = memref.load %arg1[%c14] : memref<22xf32, #tpu.memory_space<smem>>
    %65 = vector.broadcast %64 : f32 to vector<1x128xf32>
    %66 = arith.mulf %65, %24 : vector<1x128xf32>
    %67 = arith.addf %63, %66 : vector<1x128xf32>
    %c17 = arith.constant 17 : index
    %68 = memref.load %arg1[%c17] : memref<22xf32, #tpu.memory_space<smem>>
    %69 = vector.broadcast %68 : f32 to vector<1x128xf32>
    %70 = arith.addf %67, %69 : vector<1x128xf32>
    %cst_6 = arith.constant 0.000000e+00 : f32
    %71 = vector.broadcast %cst_6 : f32 to vector<1x128xf32>
    %72 = arith.maximumf %70, %71 : vector<1x128xf32>
    %c18 = arith.constant 18 : index
    %73 = memref.load %arg1[%c18] : memref<22xf32, #tpu.memory_space<smem>>
    %74 = vector.broadcast %73 : f32 to vector<1x128xf32>
    %75 = arith.mulf %74, %40 : vector<1x128xf32>
    %c19 = arith.constant 19 : index
    %76 = memref.load %arg1[%c19] : memref<22xf32, #tpu.memory_space<smem>>
    %77 = vector.broadcast %76 : f32 to vector<1x128xf32>
    %78 = arith.mulf %77, %56 : vector<1x128xf32>
    %79 = arith.addf %75, %78 : vector<1x128xf32>
    %c20 = arith.constant 20 : index
    %80 = memref.load %arg1[%c20] : memref<22xf32, #tpu.memory_space<smem>>
    %81 = vector.broadcast %80 : f32 to vector<1x128xf32>
    %82 = arith.mulf %81, %72 : vector<1x128xf32>
    %83 = arith.addf %79, %82 : vector<1x128xf32>
    %c21 = arith.constant 21 : index
    %84 = memref.load %arg1[%c21] : memref<22xf32, #tpu.memory_space<smem>>
    %85 = vector.broadcast %84 : f32 to vector<1x128xf32>
    %86 = arith.addf %83, %85 : vector<1x128xf32>
    %cst_7 = arith.constant 5.000000e-01 : f32
    %87 = vector.broadcast %cst_7 : f32 to vector<1x128xf32>
    %88 = arith.mulf %87, %86 : vector<1x128xf32>
    %89 = math.tanh %88 : vector<1x128xf32>
    %cst_8 = arith.constant 5.000000e-01 : f32
    %90 = vector.broadcast %cst_8 : f32 to vector<1x128xf32>
    %91 = arith.mulf %90, %89 : vector<1x128xf32>
    %cst_9 = arith.constant 5.000000e-01 : f32
    %92 = vector.broadcast %cst_9 : f32 to vector<1x128xf32>
    %93 = arith.addf %91, %92 : vector<1x128xf32>
    %c0_10 = arith.constant 0 : index
    %c0_11 = arith.constant 0 : index
    %94 = vector.load %arg3[%c0_10, %c0_11] : memref<1x128xf32, #tpu.memory_space<vmem>>, vector<1x128xf32>
    tpu.vector_store %arg3[%c0_10, %c0_11], %93 {strides = array<i32>} : memref<1x128xf32, #tpu.memory_space<vmem>>, vector<1x128xf32>,
    return
  }
  func.func @transform_0(%arg0: i32) -> i32 {
    %c0_i32 = arith.constant 0 : i32
    %c0_i32_0 = arith.constant 0 : i32
    return %c0_i32 : i32
  }
  func.func @transform_1(%arg0: i32) -> (i32, i32) {
    %c0_i32 = arith.constant 0 : i32
    %c0_i32_0 = arith.constant 0 : i32
    return %arg0, %c0_i32 : i32, i32
  }
  func.func @transform_2(%arg0: i32) -> (i32, i32) {
    %c0_i32 = arith.constant 0 : i32
    %c0_i32_0 = arith.constant 0 : i32
    return %arg0, %c0_i32 : i32, i32
  }
}

</mosaic_0001>

<llo_original>
// kernel: tpu_custom_call.1
$region0: #{tpu_custom_call.1}
  #allocation0 [shape = 'u32[]', space=smem, size = 0x4, offset = 0x4, fixed_abs, tag = 'smem constant byte address 0x4 - core index']
  #allocation1 [shape = 'u32[144,128]{1,0:T(1,128)}', space=vmem, size = 0x12000, scoped, tag = 'internal scratch']
  %s0 = inlined_call_operand.hbm [shape: f32[22], index: 0, kind: input, shape index: {}]
  %s1 = inlined_call_operand.vmem [shape: f32[1,128], index: 1, kind: input, shape index: {}]
  %s2 = inlined_call_operand.hbm [shape: f32[1,128], index: 2, kind: output, shape index: {}]
  %s3 = sld [smem:[#allocation0]]
  $region22: #{tpu_custom_call.1} parent=0
    _
  %s5 = ssub.s32 1, %s3
  %s6 = scalar_select 0, %s5, %s3
  $region1: #{tpu_custom_call.1} parent=0
    #allocation2 [shape = 'u8[512]{0}', space=smem, size = 0x200, scoped, tag = 'input window, operand 0, single buffered']
    #allocation3 [shape = 's32[1]{0}', space=sflag, size = 0x4, scoped, tag = 'scoped memory for tpu_custom_call.1']
    #allocation4 [shape = 's32[1]{0}', space=sflag, size = 0x4, scoped, tag = 'scoped memory for tpu_custom_call.1']
    #allocation5 [shape = 'u8[512]{0}', space=vmem, size = 0x400, scoped, tag = 'output window, operand 0, single buffered']
    %7 = vsyncpa [#allocation4], 0
    %8 = vsyncpa [#allocation3], 0
    // Predicated region
    $region2: #{tpu_custom_call.1} parent=1 // pred_check
      _
    $region3: #{tpu_custom_call.1} parent=1 // pred_check_branch
      %10 = sbr.rel (0) target = $region5
    $region4: #{tpu_custom_call.1} parent=1 // pred_region
      %s12 = ssub.s32 16, 16
      %13 = vsyncadd [#allocation4], %s12
      %16 = dma.hbm_to_smem %s0, 16, [#allocation2], [#allocation4]
    $region5: #{tpu_custom_call.1} parent=1 // pred_fallthru
      _
    // Predicated region
    $region6: #{tpu_custom_call.1} parent=1 // pred_check
      _
    $region7: #{tpu_custom_call.1} parent=1 // pred_check_branch
      %18 = sbr.rel (0) target = $region9
    $region8: #{tpu_custom_call.1} parent=1 // pred_region
      _
    $region9: #{tpu_custom_call.1} parent=1 // pred_fallthru
      _
    // Predicated region
    $region10: #{tpu_custom_call.1} parent=1 // pred_check
      _
    $region11: #{tpu_custom_call.1} parent=1 // pred_check_branch
      %20 = sbr.rel (0) target = $region13
    $region12: #{tpu_custom_call.1} parent=1 // pred_region
      %21 = dma.done [#allocation4], 16
    $region13: #{tpu_custom_call.1} parent=1 // pred_fallthru
      _
    %22 = sfence
    %v23 = vld [vmem:[%s1] sm:$0x1]
    %s24 = sld [smem:[#allocation2]]
    %v25 = vstv %s24
    %v26 = vmul.f32 %v25, %v23
    %s27 = sld [smem:[#allocation2 + $0x3]]
    %v28 = vstv %s27
    %v29 = vadd.f32 %v26, %v28
    %v30 = vmax.f32 %v29, 0.0
    %s31 = sld [smem:[#allocation2 + $0x1]]
    %v32 = vstv %s31
    %v33 = vmul.f32 %v32, %v23
    %s34 = sld [smem:[#allocation2 + $0x4]]
    %v35 = vstv %s34
    %v36 = vadd.f32 %v33, %v35
    %v37 = vmax.f32 %v36, 0.0
    %s38 = sld [smem:[#allocation2 + $0x2]]
    %v39 = vstv %s38
    %v40 = vmul.f32 %v39, %v23
    %s41 = sld [smem:[#allocation2 + $0x5]]
    %v42 = vstv %s41
    %v43 = vadd.f32 %v40, %v42
    %v44 = vmax.f32 %v43, 0.0
    %s45 = sld [smem:[#allocation2 + $0x6]]
    %v46 = vstv %s45
    %v47 = vmul.f32 %v46, %v30
    %s48 = sld [smem:[#allocation2 + $0x7]]
    %v49 = vstv %s48
    %v50 = vmul.f32 %v49, %v37
    %v51 = vadd.f32 %v47, %v50
    %s52 = sld [smem:[#allocation2 + $0x8]]
    %v53 = vstv %s52
    %v54 = vmul.f32 %v53, %v44
    %v55 = vadd.f32 %v51, %v54
    %s56 = sld [smem:[#allocation2 + $0xf]]
    %v57 = vstv %s56
    %v58 = vadd.f32 %v55, %v57
    %v59 = vmax.f32 %v58, 0.0
    %s60 = sld [smem:[#allocation2 + $0x9]]
    %v61 = vstv %s60
    %v62 = vmul.f32 %v61, %v30
    %s63 = sld [smem:[#allocation2 + $0xa]]
    %v64 = vstv %s63
    %v65 = vmul.f32 %v64, %v37
    %v66 = vadd.f32 %v62, %v65
    %s67 = sld [smem:[#allocation2 + $0xb]]
    %v68 = vstv %s67
    %v69 = vmul.f32 %v68, %v44
    %v70 = vadd.f32 %v66, %v69
    %s71 = sld [smem:[#allocation2 + $0x10]]
    %v72 = vstv %s71
    %v73 = vadd.f32 %v70, %v72
    %v74 = vmax.f32 %v73, 0.0
    %s75 = sld [smem:[#allocation2 + $0xc]]
    %v76 = vstv %s75
    %v77 = vmul.f32 %v76, %v30
    %s78 = sld [smem:[#allocation2 + $0xd]]
    %v79 = vstv %s78
    %v80 = vmul.f32 %v79, %v37
    %v81 = vadd.f32 %v77, %v80
    %s82 = sld [smem:[#allocation2 + $0xe]]
    %v83 = vstv %s82
    %v84 = vmul.f32 %v83, %v44
    %v85 = vadd.f32 %v81, %v84
    %s86 = sld [smem:[#allocation2 + $0x11]]
    %v87 = vstv %s86
    %v88 = vadd.f32 %v85, %v87
    %v89 = vmax.f32 %v88, 0.0
    %s90 = sld [smem:[#allocation2 + $0x12]]
    %v91 = vstv %s90
    %v92 = vmul.f32 %v91, %v59
    %s93 = sld [smem:[#allocation2 + $0x13]]
    %v94 = vstv %s93
    %v95 = vmul.f32 %v94, %v74
    %v96 = vadd.f32 %v92, %v95
    %s97 = sld [smem:[#allocation2 + $0x14]]
    %v98 = vstv %s97
    %v99 = vmul.f32 %v98, %v89
    %v100 = vadd.f32 %v96, %v99
    %s101 = sld [smem:[#allocation2 + $0x15]]
    %v102 = vstv %s101
    %v103 = vadd.f32 %v100, %v102
    %v104 = vmul.f32 %v103, 0.5
    %v105 = vtanh.pop %v104
    %v106 = vmul.f32 %v105, 0.5
    %v107 = vadd.f32 %v106, 0.5
    %108 = vst [vmem:[#allocation5] sm:$0x1] %v107
    // Predicated region
    $region14: #{tpu_custom_call.1} parent=1 // pred_check
      _
    $region15: #{tpu_custom_call.1} parent=1 // pred_check_branch
      %110 = sbr.rel (0) target = $region17
    $region16: #{tpu_custom_call.1} parent=1 // pred_region
      %s112 = ssub.s32 16, 16
      %113 = vsyncadd [#allocation3], %s112
      %s115 = sshll.u32 [#allocation5], 4
      %s116 = int_to_ptr.vmem [resolvable:$true] %s115
      %118 = dma.vmem_to_hbm [thread:$0]  %s116, 16, %s2, [#allocation3]
    $region17: #{tpu_custom_call.1} parent=1 // pred_fallthru
      _
    // Predicated region
    $region18: #{tpu_custom_call.1} parent=1 // pred_check
      _
    $region19: #{tpu_custom_call.1} parent=1 // pred_check_branch
      %120 = sbr.rel (0) target = $region21
    $region20: #{tpu_custom_call.1} parent=1 // pred_region
      %121 = dma.done [#allocation3], 16
    $region21: #{tpu_custom_call.1} parent=1 // pred_fallthru
      _
    %122 = vsyncpa [#allocation3], 1
    %123 = vsyncpa [#allocation4], 1

</llo_original>
